<compile_context>
chip_gen: v7x
topology: tpu7x:2x2x1
jax: 0.10.0
libtpu: 0.0.40
codegen_flags: <defaults>
</compile_context>

<pallas_src>
import jax
import jax.numpy as jnp
from jax.experimental import pallas as pl
from jax.experimental.pallas import tpu as pltpu


def _round_up(x, m):
    return ((x + m - 1) // m) * m


def _skipgram_kernel(x_ref, w_ref, b_ref, out_ref, m_ref, l_ref):
    # x_ref:   (block_b, D)       bf16  embedded rows (resident per batch tile)
    # w_ref:   (D, block_v)       bf16  linear1 weight tile
    # b_ref:   (1, block_v)       f32   linear1 bias tile
    # out_ref: (block_b, block_v) f32   log-prob tile (written only in pass 1)
    # m_ref, l_ref: (block_b, 1)  f32   running max / running sum-exp
    p = pl.program_id(1)          # 0: statistics pass, 1: write pass
    j = pl.program_id(2)          # vocab tile index

    @pl.when(jnp.logical_and(p == 0, j == 0))
    def _():
        m_ref[...] = jnp.full_like(m_ref, -jnp.inf)
        l_ref[...] = jnp.zeros_like(l_ref)

    # MXU matmul with f32 accumulation; softmax math stays in f32.
    logits = jnp.dot(
        x_ref[...], w_ref[...], preferred_element_type=jnp.float32
    ) + b_ref[...]                                        # (block_b, block_v)

    @pl.when(p == 0)
    def _():
        # Online running max / log-sum-exp over the vocab axis.
        m_prev = m_ref[...]
        m_new = jnp.maximum(m_prev, jnp.max(logits, axis=-1, keepdims=True))
        alpha = jnp.exp(m_prev - m_new)
        l_ref[...] = alpha * l_ref[...] + jnp.sum(
            jnp.exp(logits - m_new), axis=-1, keepdims=True
        )
        m_ref[...] = m_new

    @pl.when(p == 1)
    def _():
        lse = m_ref[...] + jnp.log(l_ref[...])
        out_ref[...] = logits - lse


def _choose_batch_tile(B, block_b):
    """Pick (batch tile, padded batch) so blocks are 8-aligned and, for large
    batches, the 'parallel' batch axis has >= 2 blocks (v7x has 2 TCs)."""
    if block_b is not None:
        bb = _round_up(block_b, 8)
        return bb, _round_up(max(B, bb), bb)
    Bp = _round_up(max(B, 8), 8)
    if Bp <= 128:
        return Bp, Bp                          # one small tile
    if Bp <= 512:
        bb = _round_up((Bp + 1) // 2, 8)       # two tiles
        return bb, _round_up(Bp, bb)
    return 256, _round_up(Bp, 256)             # large batch: 256-row tiles


def make_skipgram_forward(emb_table, w, b, *, block_b=None, block_v=1024):
    """Build a jitted forward(token_ids) -> log_softmax(emb[ids] @ w + b).

    The linear weight/bias are cast to bf16/f32 and padded to a vocab-tile
    multiple ONCE here and captured persistently by the returned function
    (no per-call cast/pad traffic).
    """
    _, D = emb_table.shape
    D_w, V = w.shape
    assert D_w == D and b.shape == (V,)

    bv = min(_round_up(block_v, 128), _round_up(V, 128))
    Vp = _round_up(V, bv)
    nv = Vp // bv

    wp = w.astype(jnp.bfloat16)
    bp = b.astype(jnp.float32)
    if Vp != V:
        wp = jnp.pad(wp, ((0, 0), (0, Vp - V)))
        # -1e30 bias on padded vocab columns -> exp() underflows to 0, so the
        # log-sum-exp is unaffected; padded columns are sliced off below.
        bp = jnp.pad(bp, (0, Vp - V), constant_values=-1e30)
    bp = bp.reshape(1, Vp)
    emb = jnp.asarray(emb_table, dtype=jnp.float32)

    try:
        vmem_cap = int(pltpu.get_tpu_info().vmem_capacity_bytes)
    except Exception:
        vmem_cap = 64 << 20   # conservative: v7x per-core VMEM

    @jax.jit
    def forward(token_ids):
        B = token_ids.shape[0]
        bb, Bp = _choose_batch_tile(B, block_b)
        nb = Bp // bb

        ids = token_ids
        if Bp != B:
            ids = jnp.pad(token_ids, (0, Bp - B))   # pad rows; sliced off below
        # TODO(synk): fuse the embedding gather into the kernel via
        # num_scalar_prefetch=1 (ids in SMEM) + per-row DMA; it is a small
        # fraction of the W-streaming traffic so it is done in plain JAX here.
        x = jnp.take(emb, ids, axis=0).astype(jnp.bfloat16)        # [Bp, D]

        # VMEM budget from the actual (layout-padded) tile footprints.
        vmem_need = (
            2 * bb * _round_up(D, 128) * 2          # x tiles (bf16)
            + 2 * _round_up(D, 16) * bv * 2         # W tiles (bf16)
            + 2 * 8 * bv * 4                        # bias tiles (f32)
            + 2 * bb * bv * 4                       # output tiles (f32)
            + 2 * bb * 128 * 4                      # m/l scratch (lane padded)
        )
        vmem_limit = max(int(vmem_need * 1.5) + (2 << 20), 16 << 20)
        vmem_limit = min(vmem_limit, int(vmem_cap * 0.85))

        cost = pl.CostEstimate(
            flops=int(2 * 2 * Bp * D * Vp),                 # two matmul passes
            transcendentals=int(Bp * Vp + Bp),              # exp + log
            bytes_accessed=int(
                nb * 2 * D * Vp * 2      # W streamed twice per batch tile
                + Bp * Vp * 4            # output write
                + Bp * D * 2             # activations
                + nb * 2 * Vp * 4        # bias
            ),
        )

        out = pl.pallas_call(
            _skipgram_kernel,
            out_shape=jax.ShapeDtypeStruct((Bp, Vp), jnp.float32),
            grid_spec=pltpu.PrefetchScalarGridSpec(
                num_scalar_prefetch=0,
                grid=(nb, 2, nv),                         # vocab (reduction) last
                in_specs=[
                    pl.BlockSpec((bb, D), lambda i, p, j: (i, 0)),   # x (resident)
                    pl.BlockSpec((D, bv), lambda i, p, j: (0, j)),   # W tile
                    pl.BlockSpec((1, bv), lambda i, p, j: (0, j)),   # bias tile
                ],
                # Pass 0 parks the output on block (i, 0) and never writes it;
                # pass 1 writes block (i, j). Each block index is active for a
                # single contiguous run -> exactly one writeback, no epilogue.
                out_specs=pl.BlockSpec((bb, bv), lambda i, p, j: (i, j * p)),
                scratch_shapes=[
                    pltpu.VMEM((bb, 1), jnp.float32),     # running max
                    pltpu.VMEM((bb, 1), jnp.float32),     # running sum-exp
                ],
            ),
            compiler_params=pltpu.CompilerParams(
                dimension_semantics=("parallel", "arbitrary", "arbitrary"),
                vmem_limit_bytes=vmem_limit,
            ),
            cost_estimate=cost,
        )(x, wp, bp)

        return out[:B, :V]

    return forward


if __name__ == "__main__":
    # Small, deterministic problem sizes.
    vocab_size = 256
    embedding_dim = 32
    batch = 8

    key = jax.random.PRNGKey(0)
    k_emb, k_w, k_b, k_ids = jax.random.split(key, 4)

    emb_table = jax.random.normal(k_emb, (vocab_size, embedding_dim),
                                  dtype=jnp.float32)
    w = jax.random.normal(k_w, (embedding_dim, vocab_size),
                          dtype=jnp.float32) * (1.0 / jnp.sqrt(embedding_dim))
    b = jax.random.normal(k_b, (vocab_size,), dtype=jnp.float32) * 0.01

    token_ids = jax.random.randint(k_ids, (batch,), 0, vocab_size,
                                   dtype=jnp.int32)

    forward = make_skipgram_forward(emb_table, w, b)
    out = jax.block_until_ready(forward(token_ids))
    assert out.shape == (batch, vocab_size)

    # Reference 1: same bf16 matmul operands, f32 accumulation (tight check of
    # the two-pass tiling + online log-sum-exp).
    xb = jnp.take(emb_table, token_ids, axis=0).astype(jnp.bfloat16)
    logits_bf16 = jnp.dot(xb, w.astype(jnp.bfloat16),
                          preferred_element_type=jnp.float32) + b
    ref_bf16 = jax.nn.log_softmax(logits_bf16, axis=-1)
    assert jnp.allclose(out, ref_bf16, atol=1e-3, rtol=1e-3), \
        "mismatch vs bf16 reference"

    # Reference 2: full-f32 PyTorch-equivalent forward (loose tolerance,
    # accounts for bf16 matmul operands).
    ref_f32 = jax.nn.log_softmax(
        jnp.take(emb_table, token_ids, axis=0) @ w + b, axis=-1)
    assert jnp.allclose(out, ref_f32, atol=5e-2, rtol=5e-2), \
        "mismatch vs f32 reference"

    print("KERNEL_OK")
</pallas_src>

<mosaic_0001>
module attributes {stable_mosaic.version = 11 : i64} {
  func.func @_skipgram_kernel(%arg0: i32, %arg1: i32, %arg2: i32, %arg3: memref<8x32xbf16, #tpu.memory_space<vmem>>, %arg4: memref<32x256xbf16, #tpu.memory_space<vmem>>, %arg5: memref<1x256xf32, #tpu.memory_space<vmem>>, %arg6: memref<8x256xf32, #tpu.memory_space<vmem>>, %arg7: memref<8x1xf32, #tpu.memory_space<vmem>>, %arg8: memref<8x1xf32, #tpu.memory_space<vmem>>) attributes {dimension_semantics = [#tpu.dimension_semantics<parallel>, #tpu.dimension_semantics<arbitrary>, #tpu.dimension_semantics<arbitrary>], iteration_bounds = array<i64: 1, 2, 1>, scalar_prefetch = 0 : i64, scratch_operands = 2 : i64, tpu.core_type = #tpu.core_type<tc>, window_params = [{transform_indices = @transform_0, window_bounds = array<i64: 8, 32>}, {transform_indices = @transform_1, window_bounds = array<i64: 32, 256>}, {transform_indices = @transform_2, window_bounds = array<i64: 1, 256>}, {transform_indices = @transform_3, window_bounds = array<i64: 8, 256>}]} {
    %c0_i32 = arith.constant 0 : i32
    %0 = arith.cmpi eq, %arg1, %c0_i32 : i32
    %c0_i32_0 = arith.constant 0 : i32
    %1 = arith.cmpi eq, %arg2, %c0_i32_0 : i32
    %2 = arith.andi %0, %1 : i1
    %3 = arith.extui %2 : i1 to i32
    %c0_i32_1 = arith.constant 0 : i32
    %4 = arith.cmpi ne, %3, %c0_i32_1 : i32
    scf.if %4 {
      %cst_10 = arith.constant 0xFF800000 : f32
      %17 = vector.broadcast %cst_10 : f32 to vector<8x1xf32>
      %c0_11 = arith.constant 0 : index
      %c0_12 = arith.constant 0 : index
      %18 = vector.load %arg7[%c0_11, %c0_12] : memref<8x1xf32, #tpu.memory_space<vmem>>, vector<8x1xf32>
      tpu.vector_store %arg7[%c0_11, %c0_12], %17 {strides = array<i32>} : memref<8x1xf32, #tpu.memory_space<vmem>>, vector<8x1xf32>,
      %cst_13 = arith.constant 0.000000e+00 : f32
      %19 = vector.broadcast %cst_13 : f32 to vector<8x1xf32>
      %c0_14 = arith.constant 0 : index
      %c0_15 = arith.constant 0 : index
      %20 = vector.load %arg8[%c0_14, %c0_15] : memref<8x1xf32, #tpu.memory_space<vmem>>, vector<8x1xf32>
      tpu.vector_store %arg8[%c0_14, %c0_15], %19 {strides = array<i32>} : memref<8x1xf32, #tpu.memory_space<vmem>>, vector<8x1xf32>,
    } else {
    }
    %c0 = arith.constant 0 : index
    %c0_2 = arith.constant 0 : index
    %5 = vector.load %arg3[%c0, %c0_2] : memref<8x32xbf16, #tpu.memory_space<vmem>>, vector<8x32xbf16>
    %c0_3 = arith.constant 0 : index
    %c0_4 = arith.constant 0 : index
    %6 = vector.load %arg4[%c0_3, %c0_4] : memref<32x256xbf16, #tpu.memory_space<vmem>>, vector<32x256xbf16>
    %cst = arith.constant dense<0.000000e+00> : vector<8x256xf32>
    %7 = tpu.matmul %5, %6, %cst {dimension_numbers = #tpu.dot_dimension_numbers<[1], [0], [0], [1], [0, 0, 1, 1], [], []>} : vector<8x32xbf16>, vector<32x256xbf16>, vector<8x256xf32> -> vector<8x256xf32>
    %c0_5 = arith.constant 0 : index
    %c0_6 = arith.constant 0 : index
    %8 = vector.load %arg5[%c0_5, %c0_6] : memref<1x256xf32, #tpu.memory_space<vmem>>, vector<1x256xf32>
    %9 = vector.broadcast %8 : vector<1x256xf32> to vector<8x256xf32>
    %10 = arith.addf %7, %9 : vector<8x256xf32>
    %c0_i32_7 = arith.constant 0 : i32
    %11 = arith.cmpi eq, %arg1, %c0_i32_7 : i32
    %12 = arith.extui %11 : i1 to i32
    %c0_i32_8 = arith.constant 0 : i32
    %13 = arith.cmpi ne, %12, %c0_i32_8 : i32
    scf.if %13 {
      %c0_10 = arith.constant 0 : index
      %c0_11 = arith.constant 0 : index
      %17 = vector.load %arg7[%c0_10, %c0_11] : memref<8x1xf32, #tpu.memory_space<vmem>>, vector<8x1xf32>
      %cst_12 = arith.constant dense<0xFF800000> : vector<8xf32>
      %18 = vector.multi_reduction <maximumf>, %10, %cst_12 [1] : vector<8x256xf32> to vector<8xf32>
      %19 = vector.shape_cast %18 : vector<8xf32> to vector<8x1xf32>
      %20 = arith.maximumf %17, %19 : vector<8x1xf32>
      %21 = arith.subf %17, %20 : vector<8x1xf32>
      %22 = math.exp %21 : vector<8x1xf32>
      %c0_13 = arith.constant 0 : index
      %c0_14 = arith.constant 0 : index
      %23 = vector.load %arg8[%c0_13, %c0_14] : memref<8x1xf32, #tpu.memory_space<vmem>>, vector<8x1xf32>
      %24 = arith.mulf %22, %23 : vector<8x1xf32>
      %25 = vector.broadcast %20 : vector<8x1xf32> to vector<8x256xf32>
      %26 = arith.subf %10, %25 : vector<8x256xf32>
      %27 = math.exp %26 : vector<8x256xf32>
      %cst_15 = arith.constant dense<0.000000e+00> : vector<8xf32>
      %28 = vector.multi_reduction <add>, %27, %cst_15 [1] : vector<8x256xf32> to vector<8xf32>
      %29 = vector.shape_cast %28 : vector<8xf32> to vector<8x1xf32>
      %30 = arith.addf %24, %29 : vector<8x1xf32>
      %c0_16 = arith.constant 0 : index
      %c0_17 = arith.constant 0 : index
      %31 = vector.load %arg8[%c0_16, %c0_17] : memref<8x1xf32, #tpu.memory_space<vmem>>, vector<8x1xf32>
      tpu.vector_store %arg8[%c0_16, %c0_17], %30 {strides = array<i32>} : memref<8x1xf32, #tpu.memory_space<vmem>>, vector<8x1xf32>,
      %c0_18 = arith.constant 0 : index
      %c0_19 = arith.constant 0 : index
      %32 = vector.load %arg7[%c0_18, %c0_19] : memref<8x1xf32, #tpu.memory_space<vmem>>, vector<8x1xf32>
      tpu.vector_store %arg7[%c0_18, %c0_19], %20 {strides = array<i32>} : memref<8x1xf32, #tpu.memory_space<vmem>>, vector<8x1xf32>,
    } else {
    }
    %c1_i32 = arith.constant 1 : i32
    %14 = arith.cmpi eq, %arg1, %c1_i32 : i32
    %15 = arith.extui %14 : i1 to i32
    %c0_i32_9 = arith.constant 0 : i32
    %16 = arith.cmpi ne, %15, %c0_i32_9 : i32
    scf.if %16 {
      %c0_10 = arith.constant 0 : index
      %c0_11 = arith.constant 0 : index
      %17 = vector.load %arg7[%c0_10, %c0_11] : memref<8x1xf32, #tpu.memory_space<vmem>>, vector<8x1xf32>
      %c0_12 = arith.constant 0 : index
      %c0_13 = arith.constant 0 : index
      %18 = vector.load %arg8[%c0_12, %c0_13] : memref<8x1xf32, #tpu.memory_space<vmem>>, vector<8x1xf32>
      %19 = math.log %18 : vector<8x1xf32>
      %20 = arith.addf %17, %19 : vector<8x1xf32>
      %21 = vector.broadcast %20 : vector<8x1xf32> to vector<8x256xf32>
      %22 = arith.subf %10, %21 : vector<8x256xf32>
      %c0_14 = arith.constant 0 : index
      %c0_15 = arith.constant 0 : index
      %23 = vector.load %arg6[%c0_14, %c0_15] : memref<8x256xf32, #tpu.memory_space<vmem>>, vector<8x256xf32>
      tpu.vector_store %arg6[%c0_14, %c0_15], %22 {strides = array<i32>} : memref<8x256xf32, #tpu.memory_space<vmem>>, vector<8x256xf32>,
    } else {
    }
    return
  }
  func.func @transform_0(%arg0: i32, %arg1: i32, %arg2: i32) -> (i32, i32) {
    %c0_i32 = arith.constant 0 : i32
    %c0_i32_0 = arith.constant 0 : i32
    return %arg0, %c0_i32 : i32, i32
  }
  func.func @transform_1(%arg0: i32, %arg1: i32, %arg2: i32) -> (i32, i32) {
    %c0_i32 = arith.constant 0 : i32
    %c0_i32_0 = arith.constant 0 : i32
    return %c0_i32, %arg2 : i32, i32
  }
  func.func @transform_2(%arg0: i32, %arg1: i32, %arg2: i32) -> (i32, i32) {
    %c0_i32 = arith.constant 0 : i32
    %c0_i32_0 = arith.constant 0 : i32
    return %c0_i32, %arg2 : i32, i32
  }
  func.func @transform_3(%arg0: i32, %arg1: i32, %arg2: i32) -> (i32, i32) {
    %0 = arith.muli %arg2, %arg1 : i32
    %c0_i32 = arith.constant 0 : i32
    return %arg0, %0 : i32, i32
  }
}

</mosaic_0001>

<llo_original>
// kernel: forward.1
$region0: #{forward.1}
  #allocation0 [shape = 'u32[]', space=smem, size = 0x4, offset = 0x4, fixed_abs, tag = 'smem constant byte address 0x4 - core index']
  #allocation1 [shape = 'u32[144,128]{1,0:T(1,128)}', space=vmem, size = 0x12000, scoped, tag = 'internal scratch']
  #allocation2 [shape = 'f32[8,1]{1,0:T(8,128)}', space=vmem, size = 0x1000, scoped, tag = 'scratch operand']
  #allocation3 [shape = 'f32[8,1]{1,0:T(8,128)}', space=vmem, size = 0x1000, scoped, tag = 'scratch operand']
  %s0 = inlined_call_operand.vmem [shape: bf16[8,32], index: 0, kind: input, shape index: {}]
  %s1 = inlined_call_operand.vmem [shape: bf16[32,256], index: 1, kind: input, shape index: {}]
  %s2 = inlined_call_operand.vmem [shape: f32[1,256], index: 2, kind: input, shape index: {}]
  %s3 = inlined_call_operand.hbm [shape: f32[8,256], index: 3, kind: output, shape index: {}]
  %s4 = sld [smem:[#allocation0]]
  $region57: #{forward.1} parent=0
    _
  %s6 = ssub.s32 1, %s4
  %s7 = scalar_select 0, %s6, %s4
  $region1: #{forward.1} parent=0
    #allocation4 [shape = 'u8[16384]{0}', space=vmem, size = 0x4000, scoped, tag = 'output window, operand 0']
    #allocation5 [shape = 's32[2]{0}', space=sflag, size = 0x8, scoped, tag = 'scoped memory for forward.1']
    %8 = vsyncpa [#allocation5], 0
    %s9 = scalar_lea.sflag [#allocation5], 1
    %10 = vsyncpa %s9, 0
    loop: start=0, step=1, limit=4
    $region2: #{forward.1} parent=1 // loop_pre_header
      _
    $region3: #{forward.1} parent=1 // loop_header
      %s12 = sphi 0, %s16
      %p13 = scmp.ge.s32.totalorder %s12, 4
      %s19 = sphi 0, %s38
      %s20 = sphi 0, %s34
      %s21 = sphi 0, %s30
      %s22 = sphi 0, %s19
      %s23 = sphi 0, %s20
      %s24 = sphi 0, %s21
      %s25 = sphi 0, %s22
      %s26 = sphi 0, %s23
      %s27 = sphi 0, %s24
      %s41 = sphi 0, %s43
      %s44 = sphi 0, %s41
      %s45 = sphi 0, %s44
      %s61 = sphi 0, %s45
      %s67 = sphi 0, %s69
      %s70 = sphi 0, %s67
      %s71 = sphi 0, %s70
      %s87 = sphi 0, %s71
      %s93 = sphi 0, %s95
      %s96 = sphi 0, %s93
      %s97 = sphi 0, %s96
      %s113 = sphi 0, %s97
      %s123 = sphi 0, %s125
      %s126 = sphi 0, %s123
      %s127 = sphi 0, %s126
      %s143 = sphi 0, %s127
    $region4: #{forward.1} parent=1 // loop_header_branch
      %15 = sbr.rel (%p13) target = $region8
    $region5: #{forward.1} parent=1 // loop_body
      %s17 = ssub.s32 %s12, 1
      %s18 = ssub.s32 %s12, 2
      %s28 = sadd.s32 1, %s21
      %p29 = scmp.ge.s32.totalorder %s28, 1
      %s30 = scalar_select %p29, 0, %s28
      %s31 = sadd.s32 1, %s20
      %s32 = scalar_select %p29, %s31, %s20
      %p33 = scmp.ge.s32.totalorder %s32, 2
      %s34 = scalar_select %p33, 0, %s32
      %s35 = sadd.s32 1, %s19
      %s36 = scalar_select %p33, %s35, %s19
      %p37 = scmp.ge.s32.totalorder %s36, 1
      %s38 = scalar_select %p37, 0, %s36
      %s39 = ssub.s32 %s19, %s38
      %p40 = scmp.eq.s32.totalorder %s39, 0
      %s42 = sadd.s32 %s41, 1
      %s43 = scalar_select %p40, %s41, %s42
      %p46 = pneg %p40
      %p47 = scmp.eq.s32.totalorder %s12, 1
      %p48 = por %p46, %p47
      %p49 = scmp.ne.s32.totalorder %s41, %s44
      %p50 = scmp.eq.s32.totalorder %s12, 0
      %p51 = por %p49, %p50
      %p52 = scmp.ne.s32.totalorder %s41, %s44
      %p53 = scmp.eq.s32.totalorder %s17, 1
      %p54 = por %p52, %p53
      %p55 = scmp.ne.s32.totalorder %s44, %s45
      %p56 = scmp.eq.s32.totalorder %s17, 0
      %p57 = por %p55, %p56
      %p58 = scmp.ne.s32.totalorder %s44, %s45
      %p59 = scmp.eq.s32.totalorder %s18, 1
      %p60 = por %p58, %p59
      %p62 = scmp.ne.s32.totalorder %s45, %s61
      %p63 = scmp.eq.s32.totalorder %s18, 0
      %p64 = por %p62, %p63
      %s65 = ssub.s32 %s21, %s30
      %p66 = scmp.eq.s32.totalorder %s65, 0
      %s68 = sadd.s32 %s67, 1
      %s69 = scalar_select %p66, %s67, %s68
      %p72 = pneg %p66
      %p73 = scmp.eq.s32.totalorder %s12, 1
      %p74 = por %p72, %p73
      %p75 = scmp.ne.s32.totalorder %s67, %s70
      %p76 = scmp.eq.s32.totalorder %s12, 0
      %p77 = por %p75, %p76
      %p78 = scmp.ne.s32.totalorder %s67, %s70
      %p79 = scmp.eq.s32.totalorder %s17, 1
      %p80 = por %p78, %p79
      %p81 = scmp.ne.s32.totalorder %s70, %s71
      %p82 = scmp.eq.s32.totalorder %s17, 0
      %p83 = por %p81, %p82
      %p84 = scmp.ne.s32.totalorder %s70, %s71
      %p85 = scmp.eq.s32.totalorder %s18, 1
      %p86 = por %p84, %p85
      %p88 = scmp.ne.s32.totalorder %s71, %s87
      %p89 = scmp.eq.s32.totalorder %s18, 0
      %p90 = por %p88, %p89
      %s91 = ssub.s32 %s21, %s30
      %p92 = scmp.eq.s32.totalorder %s91, 0
      %s94 = sadd.s32 %s93, 1
      %s95 = scalar_select %p92, %s93, %s94
      %p98 = pneg %p92
      %p99 = scmp.eq.s32.totalorder %s12, 1
      %p100 = por %p98, %p99
      %p101 = scmp.ne.s32.totalorder %s93, %s96
      %p102 = scmp.eq.s32.totalorder %s12, 0
      %p103 = por %p101, %p102
      %p104 = scmp.ne.s32.totalorder %s93, %s96
      %p105 = scmp.eq.s32.totalorder %s17, 1
      %p106 = por %p104, %p105
      %p107 = scmp.ne.s32.totalorder %s96, %s97
      %p108 = scmp.eq.s32.totalorder %s17, 0
      %p109 = por %p107, %p108
      %p110 = scmp.ne.s32.totalorder %s96, %s97
      %p111 = scmp.eq.s32.totalorder %s18, 1
      %p112 = por %p110, %p111
      %p114 = scmp.ne.s32.totalorder %s97, %s113
      %p115 = scmp.eq.s32.totalorder %s18, 0
      %p116 = por %p114, %p115
      %s117 = smul.u32 %s21, %s20
      %s118 = smul.u32 %s30, %s34
      %s119 = ssub.s32 %s19, %s38
      %s120 = ssub.s32 %s117, %s118
      %s121 = sor.u32 %s119, %s120
      %p122 = scmp.eq.s32.totalorder %s121, 0
      %s124 = sadd.s32 %s123, 1
      %s125 = scalar_select %p122, %s123, %s124
      %p128 = pneg %p122
      %p129 = scmp.eq.s32.totalorder %s12, 1
      %p130 = por %p128, %p129
      %p131 = scmp.ne.s32.totalorder %s123, %s126
      %p132 = scmp.eq.s32.totalorder %s12, 0
      %p133 = por %p131, %p132
      %p134 = scmp.ne.s32.totalorder %s123, %s126
      %p135 = scmp.eq.s32.totalorder %s17, 1
      %p136 = por %p134, %p135
      %p137 = scmp.ne.s32.totalorder %s126, %s127
      %p138 = scmp.eq.s32.totalorder %s17, 0
      %p139 = por %p137, %p138
      %p140 = scmp.ne.s32.totalorder %s126, %s127
      %p141 = scmp.eq.s32.totalorder %s18, 1
      %p142 = por %p140, %p141
      %p144 = scmp.ne.s32.totalorder %s127, %s143
      %p145 = scmp.eq.s32.totalorder %s18, 0
      %p146 = por %p144, %p145
      %p147 = scmp.le.s32.totalorder 1, %s12
      %p148 = scmp.lt.s32.totalorder %s12, 3
      %p149 = pnand %p147, %p148
      %p150 = pneg %p149
      // Predicated region
      $region9: #{forward.1} parent=5 // pred_check
        _
      $region10: #{forward.1} parent=5 // pred_check_branch
        %152 = sbr.rel (%p149) target = $region12
      $region11: #{forward.1} parent=5 // pred_region
        %s153 = ssub.s32 %s12, 1
        // Predicated region
        $region13: #{forward.1} parent=11 // pred_check
          %p154 = pneg %p57
        $region14: #{forward.1} parent=11 // pred_check_branch
          %156 = sbr.rel (%p154) target = $region16
        $region15: #{forward.1} parent=11 // pred_region
          %p157 = scmp.lt.s32.totalorder %s22, 0
          %s158 = scalar_select %p157, %s22, 0
          %s159 = smul.addr %s158, 4
          %s160 = scalar_lea.vmem %s0, %s159
        $region16: #{forward.1} parent=11 // pred_fallthru
          _
        // Predicated region
        $region17: #{forward.1} parent=11 // pred_check
          %p161 = pneg %p83
        $region18: #{forward.1} parent=11 // pred_check_branch
          %163 = sbr.rel (%p161) target = $region20
        $region19: #{forward.1} parent=11 // pred_region
          %s164 = smul.u32 2, %s24
          %p165 = scmp.lt.s32.totalorder %s164, 1
          %s166 = scalar_select %p165, %s164, 1
          %s167 = smul.addr %s166, 4
          %s168 = scalar_lea.vmem %s1, %s167
          %s169 = smul.u32 2, %s24
        $region20: #{forward.1} parent=11 // pred_fallthru
          _
        // Predicated region
        $region21: #{forward.1} parent=11 // pred_check
          %p170 = pneg %p109
        $region22: #{forward.1} parent=11 // pred_check_branch
          %172 = sbr.rel (%p170) target = $region24
        $region23: #{forward.1} parent=11 // pred_region
          %s173 = smul.u32 2, %s24
          %p174 = scmp.lt.s32.totalorder %s173, 1
          %s175 = scalar_select %p174, %s173, 1
          %s176 = scalar_lea.vmem %s2, %s175
          %s177 = smul.u32 2, %s24
        $region24: #{forward.1} parent=11 // pred_fallthru
          _
      $region12: #{forward.1} parent=5 // pred_fallthru
        _
      %p178 = scmp.lt.s32.totalorder %s12, 2
      // Predicated region
      $region25: #{forward.1} parent=5 // pred_check
        %p179 = pneg %p178
      $region26: #{forward.1} parent=5 // pred_check_branch
        %181 = sbr.rel (%p179) target = $region28
      $region27: #{forward.1} parent=5 // pred_region
        _
      $region28: #{forward.1} parent=5 // pred_fallthru
        _
      %p182 = scmp.le.s32.totalorder 1, %s12
      %p183 = scmp.lt.s32.totalorder %s12, 3
      %p184 = pnand %p182, %p183
      %p185 = pneg %p184
      // Predicated region
      $region29: #{forward.1} parent=5 // pred_check
        _
      $region30: #{forward.1} parent=5 // pred_check_branch
        %187 = sbr.rel (%p184) target = $region32
      $region31: #{forward.1} parent=5 // pred_region
        %s188 = ssub.s32 %s12, 1
        %p189 = scmp.lt.s32.totalorder %s22, 0
        %s190 = scalar_select %p189, %s22, 0
        %s191 = smul.addr %s190, 4
        %s192 = scalar_lea.vmem %s0, %s191
        %p193 = pneg %p57
        %p194 = pneg %p54
        %s195 = smul.u32 2, %s24
        %p196 = scmp.lt.s32.totalorder %s195, 1
        %s197 = scalar_select %p196, %s195, 1
        %s198 = smul.addr %s197, 4
        %s199 = scalar_lea.vmem %s1, %s198
        %p200 = pneg %p83
        %p201 = pneg %p80
        %s202 = smul.u32 2, %s24
        %p203 = scmp.lt.s32.totalorder %s202, 1
        %s204 = scalar_select %p203, %s202, 1
        %s205 = scalar_lea.vmem %s2, %s204
        %p206 = pneg %p109
        %p207 = pneg %p106
        %p208 = pneg %p139
        %p209 = pneg %p136
        %s210 = sand.u32 %s126, 1
        %s211 = scalar_lea.sflag [#allocation5], %s210
        %s212 = sand.u32 %s126, 1
        %s213 = smul.addr %s212, 16
        %s214 = scalar_lea.vmem [#allocation4], %s213
        %p215 = scmp.lt.s32.totalorder %s22, 0
        %s216 = scalar_select %p215, %s22, 0
        %s217 = smul.addr %s216, 4
        %s218 = scalar_lea.vmem %s0, %s217
        %s219 = smul.u32 2, %s24
        %p220 = scmp.lt.s32.totalorder %s219, 1
        %s221 = scalar_select %p220, %s219, 1
        %s222 = smul.addr %s221, 4
        %s223 = scalar_lea.vmem %s1, %s222
        %s224 = smul.u32 2, %s24
        %s225 = smul.u32 2, %s24
        %p226 = scmp.lt.s32.totalorder %s225, 1
        %s227 = scalar_select %p226, %s225, 1
        %s228 = scalar_lea.vmem %s2, %s227
        %s229 = smul.u32 2, %s24
        %s230 = smul.u32 %s24, %s23
        %s231 = smul.u32 2, %s230
        %p233 = scmp.eq.s32.totalorder %s23, 0
        %p234 = scmp.eq.s32.totalorder %s24, 0
        %p235 = pnand %p233, %p234
        %p236 = pneg %p235
        // Predicated region
        $region33: #{forward.1} parent=31 // pred_check
          _
        $region34: #{forward.1} parent=31 // pred_check_branch
          %238 = sbr.rel (%p235) target = $region36
        $region35: #{forward.1} parent=31 // pred_region
          %vm239 = vcmask 7168
          %240 = vst.msk [vmem:[#allocation2] sm:$0xff] %vm239, -inf
          %241 = vst.msk [vmem:[#allocation3] sm:$0xff] %vm239, 0.0
        $region36: #{forward.1} parent=31 // pred_fallthru
          _
        %v242 = vld [vmem:[%s218] sm:$0xf]
        %v243 = vld [vmem:[%s223] sm:$0xff]
        %v244 = vld [vmem:[%s223 + $0x8] sm:$0xff]
        %v245 = vld [vmem:[%s223 + $0x10] sm:$0xff]
        %v246 = vld [vmem:[%s223 + $0x18] sm:$0xff]
        %v247 = vld [vmem:[%s228] sm:$0x3]
        %v249 = vlaneseq
        %v250 = vshrl.u32 %v249, 7
        %v251 = vsub.s32 0, %v250
        %v252 = vrot.slane %v247, %v251
        %v253 = vlaneseq
        %v254 = vshrl.u32 %v253, 7
        %v255 = vsub.s32 1, %v254
        %v256 = vrot.slane %v247, %v255
        %v263 = vunpack.c.l.b16 %v243
        %v264 = vunpack.c.h.b16 %v243
        %v265 = vunpack.c.l.b16 %v244
        %v266 = vunpack.c.h.b16 %v244
        %v267 = vunpack.c.l.b16 %v245
        %v268 = vunpack.c.h.b16 %v245
        %v269 = vunpack.c.l.b16 %v246
        %v270 = vunpack.c.h.b16 %v246
        %v271 = vpack.c.b16 %v265, %v263
        %v272 = vpack.c.b16 %v266, %v264
        %v273 = vpack.c.b16 %v269, %v267
        %v274 = vpack.c.b16 %v270, %v268
        %vm279 = vcmask 261120
        %v281 = vsel %vm279, %v242, 0
        %283 = vmatprep.subr.bf16.mxu0 %v272
        %284 = vmatpush1.bf16.msra.mxu0 %v271
        %285 = vmatprep.subr.bf16.mxu0 %v274
        %286 = vmatpush1.bf16.msra.mxu0 %v273
        %287 = vmatprep.subr.bf16.mxu0 0
        %288 = vmatpush1.bf16.msra.mxu0 0
        %289 = vmatprep.subr.bf16.mxu0 0
        %290 = vmatpush1.bf16.msra.mxu0 0
        %291 = vmatprep.subr.bf16.mxu0 0
        %292 = vmatpush1.bf16.msra.mxu0 0
        %293 = vmatprep.subr.bf16.mxu0 0
        %294 = vmatpush1.bf16.msra.mxu0 0
        %295 = vmatprep.subr.bf16.mxu0 0
        %296 = vmatpush1.bf16.msra.mxu0 0
        %297 = vmatprep.subr.bf16.mxu0 0
        %298 = vmatpush1.bf16.msra.mxu0 0
        %299 = vmatprep.subr.bf16.mxu0 0
        %300 = vmatpush1.bf16.msra.mxu0 0
        %301 = vmatprep.subr.bf16.mxu0 0
        %302 = vmatpush1.bf16.msra.mxu0 0
        %303 = vmatprep.subr.bf16.mxu0 0
        %304 = vmatpush1.bf16.msra.mxu0 0
        %305 = vmatprep.subr.bf16.mxu0 0
        %306 = vmatpush1.bf16.msra.mxu0 0
        %307 = vmatprep.subr.bf16.mxu0 0
        %308 = vmatpush1.bf16.msra.mxu0 0
        %309 = vmatprep.subr.bf16.mxu0 0
        %310 = vmatpush1.bf16.msra.mxu0 0
        %311 = vmatprep.subr.bf16.mxu0 0
        %312 = vmatpush1.bf16.msra.mxu0 0
        %313 = vmatprep.subr.bf16.mxu0 0
        %314 = vmatpush1.bf16.msra.mxu0 0
        %315 = vmatprep.mubr.bf16.mxu0 0
        %316 = vmatmul.mubr.bf16.gmra.mrb[0].mxu0 %v281
        %v317 = vpop.f32.mrb[0].mxu0
        %v318 = vadd.f32 %v252, %v317
        %v319 = vpop.f32.mrb[0].mxu0
        %v320 = vadd.f32 %v256, %v319
        %v321 = vpop.f32.mrb[0].mxu0
        %v322 = vpop.f32.mrb[0].mxu0
        %323 = vdwg.mxu0
        // Predicated region
        $region37: #{forward.1} parent=31 // pred_check
          %p324 = pneg %p233
        $region38: #{forward.1} parent=31 // pred_check_branch
          %326 = sbr.rel (%p324) target = $region40
        $region39: #{forward.1} parent=31 // pred_region
          %v327 = vld [vmem:[#allocation2] sm:$0xff]
          %v328 = vmax.f32 %v318, %v320
          %329 = vmax.xlane.f32.xlu0 %v328
          %v330 = vpop.xlane.xlu0 %329
          %v331 = vmax.f32 %v327, %v330
          %v332 = vsub.f32 %v327, %v331
          %v333 = vmul.f32 %v332, 1.442695
          %v334 = vpow.pop %v333
          %v335 = vld [vmem:[#allocation3] sm:$0xff]
          %v336 = vmul.f32 %v334, %v335
          %338 = vset.pattern.permute.xlu0 0
          %339 = vperm.xlu0 %338, %v331
          %v340 = vpop.permute.xlu0 %339
          %v342 = vsub.f32 %v318, %v340
          %v343 = vsub.f32 %v320, %v340
          %v344 = vmul.f32 %v342, 1.442695
          %v345 = vpow.pop %v344
          %v346 = vmul.f32 %v343, 1.442695
          %v347 = vpow.pop %v346
          %v348 = vadd.f32 %v345, %v347
          %349 = vadd.xlane.f32.xlu0 %v348
          %v350 = vpop.xlane.xlu0 %349
          %v351 = vadd.f32 %v336, %v350
          %vm352 = vcmask 7168
          %353 = vst.msk [vmem:[#allocation3] sm:$0xff] %vm352, %v351
          %354 = vst.msk [vmem:[#allocation2] sm:$0xff] %vm352, %v331
        $region40: #{forward.1} parent=31 // pred_fallthru
          _
        %p355 = scmp.eq.s32.totalorder %s23, 1
        // Predicated region
        $region41: #{forward.1} parent=31 // pred_check
          %p356 = pneg %p355
        $region42: #{forward.1} parent=31 // pred_check_branch
          %358 = sbr.rel (%p356) target = $region44
        $region43: #{forward.1} parent=31 // pred_region
          %v359 = vld [vmem:[#allocation2] sm:$0xff]
          %v360 = vld [vmem:[#allocation3] sm:$0xff]
          %v361 = vlog2.pop %v360
          %v362 = vmul.f32 %v361, 0.6931472
          %v363 = vadd.f32 %v359, %v362
          %365 = vset.pattern.permute.xlu0 0
          %366 = vperm.xlu0 %365, %v363
          %v367 = vpop.permute.xlu0 %366
          %v369 = vsub.f32 %v318, %v367
          %v370 = vsub.f32 %v320, %v367
          %371 = vst [vmem:[%s214] sm:$0xff] %v369
          %372 = vst [vmem:[%s214 + $0x8] sm:$0xff] %v370
        $region44: #{forward.1} parent=31 // pred_fallthru
          _
        %s373 = sand.u32 %s126, 1
        %s374 = scalar_lea.sflag [#allocation5], %s373
        %s375 = sand.u32 %s126, 1
        %s376 = smul.addr %s375, 16
        %s377 = scalar_lea.vmem [#allocation4], %s376
        // Predicated region
        $region45: #{forward.1} parent=31 // pred_check
          %p378 = pneg %p136
        $region46: #{forward.1} parent=31 // pred_check_branch
          %380 = sbr.rel (%p378) target = $region48
        $region47: #{forward.1} parent=31 // pred_region
          %s381 = smul.u32 %s24, %s23
          %s382 = smul.u32 2, %s381
          %s384 = ssub.s32 256, 256
          %385 = vsyncadd %s374, %s384
          %s386 = smul.addr %s22, 2
          %s387 = sadd.s32 %s382, %s386
          %s388 = smul.addr %s387, 128
          %s389 = scalar_lea.hbm %s3, %s388
          %s391 = sshll.u32 %s377, 4
          %s392 = int_to_ptr.vmem [resolvable:$true] %s391
          %394 = dma.vmem_to_hbm [thread:$0]  %s392, 256, %s389, %s374
        $region48: #{forward.1} parent=31 // pred_fallthru
          _
      $region32: #{forward.1} parent=5 // pred_fallthru
        _
      %p395 = scmp.le.s32.totalorder 2, %s12
      // Predicated region
      $region49: #{forward.1} parent=5 // pred_check
        %p396 = pneg %p395
      $region50: #{forward.1} parent=5 // pred_check_branch
        %398 = sbr.rel (%p396) target = $region52
      $region51: #{forward.1} parent=5 // pred_region
        %s399 = ssub.s32 %s12, 2
        // Predicated region
        $region53: #{forward.1} parent=51 // pred_check
          %p400 = pneg %p142
        $region54: #{forward.1} parent=51 // pred_check_branch
          %402 = sbr.rel (%p400) target = $region56
        $region55: #{forward.1} parent=51 // pred_region
          %s403 = sand.u32 %s127, 1
          %s404 = scalar_lea.sflag [#allocation5], %s403
          %s405 = sand.u32 %s127, 1
          %s406 = smul.addr %s405, 16
          %s407 = scalar_lea.vmem [#allocation4], %s406
          %408 = dma.done %s404, 256
        $region56: #{forward.1} parent=51 // pred_fallthru
          _
      $region52: #{forward.1} parent=5 // pred_fallthru
        _
    $region6: #{forward.1} parent=1 // loop_footer
      %s16 = sadd.s32 1, %s12
    $region7: #{forward.1} parent=1 // loop_footer_branch
      %11 = sbr.rel target = $region3
    $region8: #{forward.1} parent=1 // loop_exit
      _
    %409 = vsyncpa [#allocation5], 1
    %s410 = scalar_lea.sflag [#allocation5], 1
    %411 = vsyncpa %s410, 1

</llo_original>
